<compile_context>
chip_gen: v5e
topology: v5e:2x2
jax: 0.10.0
libtpu: 0.0.40
codegen_flags: <defaults>
</compile_context>

<pallas_src>
import functools

import jax
import jax.numpy as jnp
from jax.experimental import pallas as pl
from jax.experimental.pallas import tpu as pltpu


def _round_up(n, m):
    return ((n + m - 1) // m) * m


# --------------------------------------------------------------------------- #
# Pallas kernel: fused MLP forward + analytical input-gradient (force),
# batch-in-lanes + p-samples-per-column sublane packing.
# Ref shapes (p = pack factor, n = packed columns per tile):
#   xt: (p*D, n), w1: (p*H1, p*D), b1: (p*H1, 1), w2: (p*H2, p*H1), b2: (p*H2, 1),
#   w3: (p*H2, 1), b3: (1, 1), w1t: (p*D, p*H1), w2t: (p*H1, p*H2),
#   f: (p, n), force: (p*D, n)
# --------------------------------------------------------------------------- #
def _fe_kernel(xt_ref, w1_ref, b1_ref, w2_ref, b2_ref, w3_ref, b3_ref,
               w1t_ref, w2t_ref, f_ref, force_ref):
    p = f_ref.shape[0]                       # static pack factor
    h2 = w3_ref.shape[0] // p                # static hidden size of last hidden layer

    xt = xt_ref[...]                                                   # (p*D, n)

    # ---- forward: plain (M,K)@(K,N) MXU matmuls, batch in the lane dim
    z1 = jnp.dot(w1_ref[...], xt, preferred_element_type=jnp.float32) + b1_ref[...]
    a1 = jax.nn.sigmoid(z1)                                            # (p*H1, n)
    z2 = jnp.dot(w2_ref[...], a1, preferred_element_type=jnp.float32) + b2_ref[...]
    a2 = jax.nn.sigmoid(z2)                                            # (p*H2, n)

    # ---- output layer: VPU multiply + per-group sublane (XLU) reduction
    t = w3_ref[...] * a2                                               # (p*H2, n)
    parts = [jnp.sum(t[r * h2:(r + 1) * h2, :], axis=0, keepdims=True)
             for r in range(p)]                                        # p x (1, n)
    f_blk = parts[0] if p == 1 else jnp.concatenate(parts, axis=0)     # (p, n)
    f_ref[...] = f_blk + b3_ref[...]

    # ---- analytical backward: dF/dx (block-diagonal weights keep samples separate)
    d2 = t * (1.0 - a2)                                                # dF/dz2
    g1 = jnp.dot(w2t_ref[...], d2, preferred_element_type=jnp.float32)  # dF/da1
    d1 = g1 * a1 * (1.0 - a1)                                          # dF/dz1
    gx = jnp.dot(w1t_ref[...], d1, preferred_element_type=jnp.float32)  # dF/dx
    force_ref[...] = -gx


@functools.partial(jax.jit, static_argnames=("tile_b",))
def fc_free_energy_forward(x, params, *, tile_b=8192):
    """Returns (F, force) matching FCFreeEnergyModel.forward with output_force=True.

    x: (B, D) f32.  params: [(w1,b1), (w2,b2), (w3,b3)] torch-Linear layout
    (w: (out, in), b: (out,)).  The whole wrapper is jitted so the pack/unpack
    relayouts fuse with neighbouring XLA ops instead of extra HBM passes.
    """
    (w1, b1), (w2, b2), (w3, b3) = params
    B, D = x.shape
    H1 = w1.shape[0]
    H2 = w2.shape[0]
    f32 = jnp.float32

    # -------- sublane packing factor: fill 8 sublanes of the (8,128) tile --------
    p = max(1, 8 // D) if D < 8 else 1

    # -------- batch tile selection (samples per grid step) --------
    unit = p * 128                                   # lane-dense packed unit
    tile_b = int(tile_b)
    if B >= 2 * unit:
        # keep >= 2 grid steps when possible so v7x's two TensorCores both get work
        tile_b = min(tile_b, _round_up(-(-B // 2), unit))
    tile_b = max(unit, min(_round_up(tile_b, unit), _round_up(B, unit)))
    B_pad = _round_up(B, tile_b)
    grid = B_pad // tile_b
    C = B_pad // p                                   # total packed columns
    tile_c = tile_b // p                             # packed columns per grid step

    # -------- input packing: column c holds samples c*p .. c*p+p-1 stacked --------
    x_pad = jnp.pad(x.astype(f32), ((0, B_pad - B), (0, 0)))
    x_packed = x_pad.reshape(C, p, D).transpose(1, 2, 0).reshape(p * D, C)

    # -------- parameter prep: block-diagonal (packed) weights, both layouts --------
    w1 = w1.astype(f32)
    w2 = w2.astype(f32)
    eye = jnp.eye(p, dtype=f32)
    w1p = jnp.kron(eye, w1)                          # (p*H1, p*D)
    w2p = jnp.kron(eye, w2)                          # (p*H2, p*H1)
    w1tp = jnp.kron(eye, w1.T)                       # (p*D, p*H1)
    w2tp = jnp.kron(eye, w2.T)                       # (p*H1, p*H2)
    b1p = jnp.tile(b1.astype(f32).reshape(H1, 1), (p, 1))
    b2p = jnp.tile(b2.astype(f32).reshape(H2, 1), (p, 1))
    w3p = jnp.tile(w3.astype(f32).reshape(H2, 1), (p, 1))
    b3c = b3.astype(f32).reshape(1, 1)

    full = lambda a: pl.BlockSpec(a.shape, lambda i: (0, 0))
    ru8 = lambda n: _round_up(n, 8)

    flops = 4 * B_pad * (D * H1 + H1 * H2 + H2)      # fwd + analytical bwd (logical)
    transcendentals = B_pad * (H1 + H2)
    bytes_accessed = 4 * (C * (2 * ru8(p * D) + ru8(p))
                          + 2 * p * p * (H1 * D + H2 * H1)
                          + p * (H1 + 2 * H2) + 1)

    f_packed, force_packed = pl.pallas_call(
        _fe_kernel,
        out_shape=(jax.ShapeDtypeStruct((p, C), f32),
                   jax.ShapeDtypeStruct((p * D, C), f32)),
        grid=(grid,),
        in_specs=[
            pl.BlockSpec((p * D, tile_c), lambda i: (0, i)),   # packed x (lane-dense)
            full(w1p), full(b1p),                              # layer 1
            full(w2p), full(b2p),                              # layer 2
            full(w3p), full(b3c),                              # output layer
            full(w1tp), full(w2tp),                            # transposed copies (bwd)
        ],
        out_specs=[
            pl.BlockSpec((p, tile_c), lambda i: (0, i)),       # packed F
            pl.BlockSpec((p * D, tile_c), lambda i: (0, i)),   # packed force
        ],
        compiler_params=pltpu.CompilerParams(
            dimension_semantics=("parallel",),
            vmem_limit_bytes=48 * 1024 * 1024),
        cost_estimate=pl.CostEstimate(
            flops=flops,
            transcendentals=transcendentals,
            bytes_accessed=bytes_accessed),
    )(x_packed, w1p, b1p, w2p, b2p, w3p, b3c, w1tp, w2tp)

    # -------- unpack outputs (fused by XLA under this jit) --------
    F = f_packed.T.reshape(B_pad)[:B]
    force = force_packed.reshape(p, D, C).transpose(2, 0, 1).reshape(B_pad, D)[:B]
    return F, force


# --------------------------------------------------------------------------- #
# Deterministic parameter init (mimics torch.nn.Linear.reset_parameters bounds)
# --------------------------------------------------------------------------- #
def init_params(key, layer_dims):
    params = []
    for fan_in, fan_out in zip(layer_dims[:-1], layer_dims[1:]):
        key, kw, kb = jax.random.split(key, 3)
        bound = 1.0 / jnp.sqrt(jnp.float32(fan_in))
        w = jax.random.uniform(kw, (fan_out, fan_in), jnp.float32, -bound, bound)
        b = jax.random.uniform(kb, (fan_out,), jnp.float32, -bound, bound)
        params.append((w, b))
    return params


# Pure-JAX reference (compute_F + vmap(grad)) for a correctness check.
def _reference(x, params):
    def compute_F(xi):
        h = xi
        n = len(params)
        for i, (w, b) in enumerate(params):
            h = h @ w.T + b
            if i < n - 1:
                h = jax.nn.sigmoid(h)
        return h[0], h[0]

    grad, out = jax.vmap(jax.grad(compute_F, has_aux=True))(x)
    return out, -grad


if __name__ == "__main__":
    # Small shapes: size_of_latent_space=4, hidden_layers=[32, 32], batch=8
    B, D, H1, H2 = 8, 4, 32, 32

    key = jax.random.PRNGKey(0)
    key, kx = jax.random.split(key)
    x = jax.random.normal(kx, (B, D), jnp.float32)
    params = init_params(key, [D, H1, H2, 1])

    F, force = fc_free_energy_forward(x, params)
    jax.block_until_ready((F, force))

    F_ref, force_ref = _reference(x, params)
    assert F.shape == (B,) and force.shape == (B, D)
    assert jnp.allclose(F, F_ref, atol=1e-5, rtol=1e-5)
    assert jnp.allclose(force, force_ref, atol=1e-5, rtol=1e-5)

    print("KERNEL_OK")
</pallas_src>

<mosaic_0001>
module attributes {stable_mosaic.version = 11 : i64} {
  func.func @_fe_kernel(%arg0: i32, %arg1: memref<8x128xf32, #tpu.memory_space<vmem>>, %arg2: memref<64x8xf32, #tpu.memory_space<vmem>>, %arg3: memref<64x1xf32, #tpu.memory_space<vmem>>, %arg4: memref<64x64xf32, #tpu.memory_space<vmem>>, %arg5: memref<64x1xf32, #tpu.memory_space<vmem>>, %arg6: memref<64x1xf32, #tpu.memory_space<vmem>>, %arg7: memref<1x1xf32, #tpu.memory_space<vmem>>, %arg8: memref<8x64xf32, #tpu.memory_space<vmem>>, %arg9: memref<64x64xf32, #tpu.memory_space<vmem>>, %arg10: memref<2x128xf32, #tpu.memory_space<vmem>>, %arg11: memref<8x128xf32, #tpu.memory_space<vmem>>) attributes {dimension_semantics = [#tpu.dimension_semantics<parallel>], iteration_bounds = array<i64: 1>, scalar_prefetch = 0 : i64, scratch_operands = 0 : i64, tpu.core_type = #tpu.core_type<tc>, window_params = [{transform_indices = @transform_0, window_bounds = array<i64: 8, 128>}, {pipeline_mode = #tpu.pipeline_mode<synchronous>, transform_indices = @transform_1, window_bounds = array<i64: 64, 8>}, {pipeline_mode = #tpu.pipeline_mode<synchronous>, transform_indices = @transform_2, window_bounds = array<i64: 64, 1>}, {pipeline_mode = #tpu.pipeline_mode<synchronous>, transform_indices = @transform_3, window_bounds = array<i64: 64, 64>}, {pipeline_mode = #tpu.pipeline_mode<synchronous>, transform_indices = @transform_4, window_bounds = array<i64: 64, 1>}, {pipeline_mode = #tpu.pipeline_mode<synchronous>, transform_indices = @transform_5, window_bounds = array<i64: 64, 1>}, {pipeline_mode = #tpu.pipeline_mode<synchronous>, transform_indices = @transform_6, window_bounds = array<i64: 1, 1>}, {pipeline_mode = #tpu.pipeline_mode<synchronous>, transform_indices = @transform_7, window_bounds = array<i64: 8, 64>}, {pipeline_mode = #tpu.pipeline_mode<synchronous>, transform_indices = @transform_8, window_bounds = array<i64: 64, 64>}, {transform_indices = @transform_9, window_bounds = array<i64: 2, 128>}, {transform_indices = @transform_10, window_bounds = array<i64: 8, 128>}]} {
    %c0 = arith.constant 0 : index
    %c0_0 = arith.constant 0 : index
    %0 = vector.load %arg1[%c0, %c0_0] : memref<8x128xf32, #tpu.memory_space<vmem>>, vector<8x128xf32>
    %c0_1 = arith.constant 0 : index
    %c0_2 = arith.constant 0 : index
    %1 = vector.load %arg2[%c0_1, %c0_2] : memref<64x8xf32, #tpu.memory_space<vmem>>, vector<64x8xf32>
    %cst = arith.constant dense<0.000000e+00> : vector<64x128xf32>
    %2 = tpu.matmul %1, %0, %cst {dimension_numbers = #tpu.dot_dimension_numbers<[1], [0], [0], [1], [0, 0, 1, 1], [], []>} : vector<64x8xf32>, vector<8x128xf32>, vector<64x128xf32> -> vector<64x128xf32>
    %c0_3 = arith.constant 0 : index
    %c0_4 = arith.constant 0 : index
    %3 = vector.load %arg3[%c0_3, %c0_4] : memref<64x1xf32, #tpu.memory_space<vmem>>, vector<64x1xf32>
    %4 = vector.broadcast %3 : vector<64x1xf32> to vector<64x128xf32>
    %5 = arith.addf %2, %4 : vector<64x128xf32>
    %6 = arith.negf %5 : vector<64x128xf32>
    %7 = math.exp %6 : vector<64x128xf32>
    %cst_5 = arith.constant 1.000000e+00 : f32
    %8 = vector.broadcast %cst_5 : f32 to vector<64x128xf32>
    %9 = arith.addf %8, %7 : vector<64x128xf32>
    %10 = arith.divf %8, %9 : vector<64x128xf32>
    %c0_6 = arith.constant 0 : index
    %c0_7 = arith.constant 0 : index
    %11 = vector.load %arg4[%c0_6, %c0_7] : memref<64x64xf32, #tpu.memory_space<vmem>>, vector<64x64xf32>
    %cst_8 = arith.constant dense<0.000000e+00> : vector<64x128xf32>
    %12 = tpu.matmul %11, %10, %cst_8 {dimension_numbers = #tpu.dot_dimension_numbers<[1], [0], [0], [1], [0, 0, 1, 1], [], []>} : vector<64x64xf32>, vector<64x128xf32>, vector<64x128xf32> -> vector<64x128xf32>
    %c0_9 = arith.constant 0 : index
    %c0_10 = arith.constant 0 : index
    %13 = vector.load %arg5[%c0_9, %c0_10] : memref<64x1xf32, #tpu.memory_space<vmem>>, vector<64x1xf32>
    %14 = vector.broadcast %13 : vector<64x1xf32> to vector<64x128xf32>
    %15 = arith.addf %12, %14 : vector<64x128xf32>
    %16 = arith.negf %15 : vector<64x128xf32>
    %17 = math.exp %16 : vector<64x128xf32>
    %cst_11 = arith.constant 1.000000e+00 : f32
    %18 = vector.broadcast %cst_11 : f32 to vector<64x128xf32>
    %19 = arith.addf %18, %17 : vector<64x128xf32>
    %20 = arith.divf %18, %19 : vector<64x128xf32>
    %c0_12 = arith.constant 0 : index
    %c0_13 = arith.constant 0 : index
    %21 = vector.load %arg6[%c0_12, %c0_13] : memref<64x1xf32, #tpu.memory_space<vmem>>, vector<64x1xf32>
    %22 = vector.broadcast %21 : vector<64x1xf32> to vector<64x128xf32>
    %23 = arith.mulf %22, %20 : vector<64x128xf32>
    %24 = vector.extract_strided_slice %23 {offsets = [0, 0], sizes = [32, 128], strides = [1, 1]} : vector<64x128xf32> to vector<32x128xf32>
    %cst_14 = arith.constant dense<0.000000e+00> : vector<128xf32>
    %25 = vector.multi_reduction <add>, %24, %cst_14 [0] : vector<32x128xf32> to vector<128xf32>
    %26 = vector.shape_cast %25 : vector<128xf32> to vector<1x128xf32>
    %27 = vector.extract_strided_slice %23 {offsets = [32, 0], sizes = [32, 128], strides = [1, 1]} : vector<64x128xf32> to vector<32x128xf32>
    %cst_15 = arith.constant dense<0.000000e+00> : vector<128xf32>
    %28 = vector.multi_reduction <add>, %27, %cst_15 [0] : vector<32x128xf32> to vector<128xf32>
    %29 = vector.shape_cast %28 : vector<128xf32> to vector<1x128xf32>
    %30 = tpu.concatenate %26, %29 in 0 : vector<1x128xf32>, vector<1x128xf32> -> vector<2x128xf32>
    %c0_16 = arith.constant 0 : index
    %c0_17 = arith.constant 0 : index
    %31 = vector.load %arg7[%c0_16, %c0_17] : memref<1x1xf32, #tpu.memory_space<vmem>>, vector<1x1xf32>
    %32 = vector.broadcast %31 : vector<1x1xf32> to vector<2x128xf32>
    %33 = arith.addf %30, %32 : vector<2x128xf32>
    %c0_18 = arith.constant 0 : index
    %c0_19 = arith.constant 0 : index
    %34 = vector.load %arg10[%c0_18, %c0_19] : memref<2x128xf32, #tpu.memory_space<vmem>>, vector<2x128xf32>
    tpu.vector_store %arg10[%c0_18, %c0_19], %33 {strides = array<i32>} : memref<2x128xf32, #tpu.memory_space<vmem>>, vector<2x128xf32>,
    %cst_20 = arith.constant 1.000000e+00 : f32
    %35 = vector.broadcast %cst_20 : f32 to vector<64x128xf32>
    %36 = arith.subf %35, %20 : vector<64x128xf32>
    %37 = arith.mulf %23, %36 : vector<64x128xf32>
    %c0_21 = arith.constant 0 : index
    %c0_22 = arith.constant 0 : index
    %38 = vector.load %arg9[%c0_21, %c0_22] : memref<64x64xf32, #tpu.memory_space<vmem>>, vector<64x64xf32>
    %cst_23 = arith.constant dense<0.000000e+00> : vector<64x128xf32>
    %39 = tpu.matmul %38, %37, %cst_23 {dimension_numbers = #tpu.dot_dimension_numbers<[1], [0], [0], [1], [0, 0, 1, 1], [], []>} : vector<64x64xf32>, vector<64x128xf32>, vector<64x128xf32> -> vector<64x128xf32>
    %40 = arith.mulf %39, %10 : vector<64x128xf32>
    %cst_24 = arith.constant 1.000000e+00 : f32
    %41 = vector.broadcast %cst_24 : f32 to vector<64x128xf32>
    %42 = arith.subf %41, %10 : vector<64x128xf32>
    %43 = arith.mulf %40, %42 : vector<64x128xf32>
    %c0_25 = arith.constant 0 : index
    %c0_26 = arith.constant 0 : index
    %44 = vector.load %arg8[%c0_25, %c0_26] : memref<8x64xf32, #tpu.memory_space<vmem>>, vector<8x64xf32>
    %cst_27 = arith.constant dense<0.000000e+00> : vector<8x128xf32>
    %45 = tpu.matmul %44, %43, %cst_27 {dimension_numbers = #tpu.dot_dimension_numbers<[1], [0], [0], [1], [0, 0, 1, 1], [], []>} : vector<8x64xf32>, vector<64x128xf32>, vector<8x128xf32> -> vector<8x128xf32>
    %cst_28 = arith.constant 0.000000e+00 : f32
    %46 = vector.broadcast %cst_28 : f32 to vector<8x128xf32>
    %47 = arith.subf %46, %45 : vector<8x128xf32>
    %c0_29 = arith.constant 0 : index
    %c0_30 = arith.constant 0 : index
    %48 = vector.load %arg11[%c0_29, %c0_30] : memref<8x128xf32, #tpu.memory_space<vmem>>, vector<8x128xf32>
    tpu.vector_store %arg11[%c0_29, %c0_30], %47 {strides = array<i32>} : memref<8x128xf32, #tpu.memory_space<vmem>>, vector<8x128xf32>,
    return
  }
  func.func @transform_0(%arg0: i32) -> (i32, i32) {
    %c0_i32 = arith.constant 0 : i32
    %c0_i32_0 = arith.constant 0 : i32
    return %c0_i32, %arg0 : i32, i32
  }
  func.func @transform_1(%arg0: i32) -> (i32, i32) {
    %c0_i32 = arith.constant 0 : i32
    %c0_i32_0 = arith.constant 0 : i32
    %c0_i32_1 = arith.constant 0 : i32
    return %c0_i32, %c0_i32_0 : i32, i32
  }
  func.func @transform_2(%arg0: i32) -> (i32, i32) {
    %c0_i32 = arith.constant 0 : i32
    %c0_i32_0 = arith.constant 0 : i32
    %c0_i32_1 = arith.constant 0 : i32
    return %c0_i32, %c0_i32_0 : i32, i32
  }
  func.func @transform_3(%arg0: i32) -> (i32, i32) {
    %c0_i32 = arith.constant 0 : i32
    %c0_i32_0 = arith.constant 0 : i32
    %c0_i32_1 = arith.constant 0 : i32
    return %c0_i32, %c0_i32_0 : i32, i32
  }
  func.func @transform_4(%arg0: i32) -> (i32, i32) {
    %c0_i32 = arith.constant 0 : i32
    %c0_i32_0 = arith.constant 0 : i32
    %c0_i32_1 = arith.constant 0 : i32
    return %c0_i32, %c0_i32_0 : i32, i32
  }
  func.func @transform_5(%arg0: i32) -> (i32, i32) {
    %c0_i32 = arith.constant 0 : i32
    %c0_i32_0 = arith.constant 0 : i32
    %c0_i32_1 = arith.constant 0 : i32
    return %c0_i32, %c0_i32_0 : i32, i32
  }
  func.func @transform_6(%arg0: i32) -> (i32, i32) {
    %c0_i32 = arith.constant 0 : i32
    %c0_i32_0 = arith.constant 0 : i32
    %c0_i32_1 = arith.constant 0 : i32
    return %c0_i32, %c0_i32_0 : i32, i32
  }
  func.func @transform_7(%arg0: i32) -> (i32, i32) {
    %c0_i32 = arith.constant 0 : i32
    %c0_i32_0 = arith.constant 0 : i32
    %c0_i32_1 = arith.constant 0 : i32
    return %c0_i32, %c0_i32_0 : i32, i32
  }
  func.func @transform_8(%arg0: i32) -> (i32, i32) {
    %c0_i32 = arith.constant 0 : i32
    %c0_i32_0 = arith.constant 0 : i32
    %c0_i32_1 = arith.constant 0 : i32
    return %c0_i32, %c0_i32_0 : i32, i32
  }
  func.func @transform_9(%arg0: i32) -> (i32, i32) {
    %c0_i32 = arith.constant 0 : i32
    %c0_i32_0 = arith.constant 0 : i32
    return %c0_i32, %arg0 : i32, i32
  }
  func.func @transform_10(%arg0: i32) -> (i32, i32) {
    %c0_i32 = arith.constant 0 : i32
    %c0_i32_0 = arith.constant 0 : i32
    return %c0_i32, %arg0 : i32, i32
  }
}

</mosaic_0001>

<llo_original>
// kernel: fc_free_energy_forward.1
$region0: #{fc_free_energy_forward.1}
  #allocation0 [shape = 'u32[]', space=smem, size = 0x4, offset = 0x4, fixed_abs, tag = 'smem constant byte address 0x4 - core index']
  #allocation1 [shape = 'u32[72,128]{1,0:T(1,128)}', space=vmem, size = 0x9000, scoped, tag = 'internal scratch']
  #allocation2 [shape = 'f32[1,1]{1,0:T(1,128)S(1)}', space=vmem, size = 0x200, scoped, tag = 'scoped memory for fc_free_energy_forward.1']
  %s0 = inlined_call_operand.vmem [shape: f32[8,128], index: 0, kind: input, shape index: {}]
  %s1 = inlined_call_operand.vmem [shape: f32[64,8], index: 1, kind: input, shape index: {}]
  %s2 = inlined_call_operand.vmem [shape: f32[64,1], index: 2, kind: input, shape index: {}]
  %s3 = inlined_call_operand.vmem [shape: f32[64,64], index: 3, kind: input, shape index: {}]
  %s4 = inlined_call_operand.vmem [shape: f32[64,1], index: 4, kind: input, shape index: {}]
  %s5 = inlined_call_operand.vmem [shape: f32[64,1], index: 5, kind: input, shape index: {}]
  %s6 = inlined_call_operand.<no memory space> [shape: f32[1,1], index: 6, kind: input, shape index: {}]
  %s7 = inlined_call_operand.vmem [shape: f32[8,64], index: 7, kind: input, shape index: {}]
  %s8 = inlined_call_operand.vmem [shape: f32[64,64], index: 8, kind: input, shape index: {}]
  %s9 = inlined_call_operand.vmem [shape: f32[2,128], index: 9, kind: output, shape index: {0}]
  %s10 = inlined_call_operand.vmem [shape: f32[8,128], index: 10, kind: output, shape index: {1}]
  %11 = xla_tuple %s9, %s10
  %s12 = sld [smem:[#allocation0]]
  $region54: #{fc_free_energy_forward.1} parent=0
    _
  %s14 = ssub.s32 1, %s12
  %s15 = scalar_select 0, %s14, %s12
  %v16 = vstv %s6
  %17 = vst [vmem:[#allocation2] sm:$0x1] %v16
  // Predicated region
  $region2: #{fc_free_energy_forward.1} parent=0 // pred_check
    _
  $region3: #{fc_free_energy_forward.1} parent=0 // pred_check_branch
    %19 = sbr.rel (0) target = $region5
  $region4: #{fc_free_energy_forward.1} parent=0 // pred_region
    _
  $region5: #{fc_free_energy_forward.1} parent=0 // pred_fallthru
    _
  // Predicated region
  $region6: #{fc_free_energy_forward.1} parent=0 // pred_check
    _
  $region7: #{fc_free_energy_forward.1} parent=0 // pred_check_branch
    %21 = sbr.rel (0) target = $region9
  $region8: #{fc_free_energy_forward.1} parent=0 // pred_region
    _
  $region9: #{fc_free_energy_forward.1} parent=0 // pred_fallthru
    _
  // Predicated region
  $region10: #{fc_free_energy_forward.1} parent=0 // pred_check
    _
  $region11: #{fc_free_energy_forward.1} parent=0 // pred_check_branch
    %23 = sbr.rel (0) target = $region13
  $region12: #{fc_free_energy_forward.1} parent=0 // pred_region
    _
  $region13: #{fc_free_energy_forward.1} parent=0 // pred_fallthru
    _
  // Predicated region
  $region14: #{fc_free_energy_forward.1} parent=0 // pred_check
    _
  $region15: #{fc_free_energy_forward.1} parent=0 // pred_check_branch
    %25 = sbr.rel (0) target = $region17
  $region16: #{fc_free_energy_forward.1} parent=0 // pred_region
    _
  $region17: #{fc_free_energy_forward.1} parent=0 // pred_fallthru
    _
  // Predicated region
  $region18: #{fc_free_energy_forward.1} parent=0 // pred_check
    _
  $region19: #{fc_free_energy_forward.1} parent=0 // pred_check_branch
    %27 = sbr.rel (0) target = $region21
  $region20: #{fc_free_energy_forward.1} parent=0 // pred_region
    _
  $region21: #{fc_free_energy_forward.1} parent=0 // pred_fallthru
    _
  // Predicated region
  $region22: #{fc_free_energy_forward.1} parent=0 // pred_check
    _
  $region23: #{fc_free_energy_forward.1} parent=0 // pred_check_branch
    %29 = sbr.rel (0) target = $region25
  $region24: #{fc_free_energy_forward.1} parent=0 // pred_region
    _
  $region25: #{fc_free_energy_forward.1} parent=0 // pred_fallthru
    _
  // Predicated region
  $region26: #{fc_free_energy_forward.1} parent=0 // pred_check
    _
  $region27: #{fc_free_energy_forward.1} parent=0 // pred_check_branch
    %31 = sbr.rel (0) target = $region29
  $region28: #{fc_free_energy_forward.1} parent=0 // pred_region
    _
  $region29: #{fc_free_energy_forward.1} parent=0 // pred_fallthru
    _
  // Predicated region
  $region30: #{fc_free_energy_forward.1} parent=0 // pred_check
    _
  $region31: #{fc_free_energy_forward.1} parent=0 // pred_check_branch
    %33 = sbr.rel (0) target = $region33
  $region32: #{fc_free_energy_forward.1} parent=0 // pred_region
    _
  $region33: #{fc_free_energy_forward.1} parent=0 // pred_fallthru
    _
  // Predicated region
  $region34: #{fc_free_energy_forward.1} parent=0 // pred_check
    _
  $region35: #{fc_free_energy_forward.1} parent=0 // pred_check_branch
    %35 = sbr.rel (0) target = $region37
  $region36: #{fc_free_energy_forward.1} parent=0 // pred_region
    _
  $region37: #{fc_free_energy_forward.1} parent=0 // pred_fallthru
    _
  %v36 = vld [vmem:[%s0] sm:$0xff]
  %v37 = vld [vmem:[%s1] sm:$0xff]
  %v38 = vld [vmem:[%s1 + $0x8] sm:$0xff]
  %v39 = vld [vmem:[%s1 + $0x10] sm:$0xff]
  %v40 = vld [vmem:[%s1 + $0x18] sm:$0xff]
  %v41 = vld [vmem:[%s1 + $0x20] sm:$0xff]
  %v42 = vld [vmem:[%s1 + $0x28] sm:$0xff]
  %v43 = vld [vmem:[%s1 + $0x30] sm:$0xff]
  %v44 = vld [vmem:[%s1 + $0x38] sm:$0xff]
  %v45 = vld [vmem:[%s2] sm:$0xff]
  %v46 = vld [vmem:[%s2 + $0x8] sm:$0xff]
  %v47 = vld [vmem:[%s2 + $0x10] sm:$0xff]
  %v48 = vld [vmem:[%s2 + $0x18] sm:$0xff]
  %v49 = vld [vmem:[%s2 + $0x20] sm:$0xff]
  %v50 = vld [vmem:[%s2 + $0x28] sm:$0xff]
  %v51 = vld [vmem:[%s2 + $0x30] sm:$0xff]
  %v52 = vld [vmem:[%s2 + $0x38] sm:$0xff]
  %54 = vset.pattern.permute.xlu0 0
  %55 = vperm.xlu0 %54, %v45
  %v56 = vpop.permute.xlu0 %55
  %59 = vset.pattern.permute.xlu0 0
  %60 = vperm.xlu0 %59, %v46
  %v61 = vpop.permute.xlu0 %60
  %64 = vset.pattern.permute.xlu0 0
  %65 = vperm.xlu0 %64, %v47
  %v66 = vpop.permute.xlu0 %65
  %69 = vset.pattern.permute.xlu0 0
  %70 = vperm.xlu0 %69, %v48
  %v71 = vpop.permute.xlu0 %70
  %74 = vset.pattern.permute.xlu0 0
  %75 = vperm.xlu0 %74, %v49
  %v76 = vpop.permute.xlu0 %75
  %79 = vset.pattern.permute.xlu0 0
  %80 = vperm.xlu0 %79, %v50
  %v81 = vpop.permute.xlu0 %80
  %84 = vset.pattern.permute.xlu0 0
  %85 = vperm.xlu0 %84, %v51
  %v86 = vpop.permute.xlu0 %85
  %89 = vset.pattern.permute.xlu0 0
  %90 = vperm.xlu0 %89, %v52
  %v91 = vpop.permute.xlu0 %90
  %vm93 = vcmask 64512
  %v95 = vsel %vm93, %v37, 0
  %v98 = vsel %vm93, %v38, 0
  %v101 = vsel %vm93, %v39, 0
  %v104 = vsel %vm93, %v40, 0
  %v107 = vsel %vm93, %v41, 0
  %v110 = vsel %vm93, %v42, 0
  %v113 = vsel %vm93, %v43, 0
  %v116 = vsel %vm93, %v44, 0
  %118 = vmatpush.msra.mxu0 0.0
  %119 = vmatpush.msra.mxu0 0.0
  %120 = vmatpush.msra.mxu0 0.0
  %121 = vmatpush.msra.mxu0 0.0
  %122 = vmatpush.msra.mxu0 0.0
  %123 = vmatpush.msra.mxu0 0.0
  %124 = vmatpush.msra.mxu0 0.0
  %125 = vmatpush.msra.mxu0 0.0
  %126 = vmatpush.msra.mxu0 0.0
  %127 = vmatpush.msra.mxu0 0.0
  %128 = vmatpush.msra.mxu0 0.0
  %129 = vmatpush.msra.mxu0 0.0
  %130 = vmatpush.msra.mxu0 0.0
  %131 = vmatpush.msra.mxu0 0.0
  %132 = vmatpush.msra.mxu0 0.0
  %133 = vmatpush.msra.mxu0 %v36
  %134 = vmatmul.f32.gmra.mxu0 %v95
  %v135 = vpop.f32.mrf.mxu0
  %v136 = vadd.f32 %v56, %v135
  %137 = vmatmul.f32.gmra.mxu0 %v98
  %v138 = vpop.f32.mrf.mxu0
  %v139 = vadd.f32 %v61, %v138
  %140 = vmatmul.f32.gmra.mxu0 %v101
  %v141 = vpop.f32.mrf.mxu0
  %v142 = vadd.f32 %v66, %v141
  %143 = vmatmul.f32.gmra.mxu0 %v104
  %v144 = vpop.f32.mrf.mxu0
  %v145 = vadd.f32 %v71, %v144
  %146 = vmatmul.f32.gmra.mxu0 %v107
  %v147 = vpop.f32.mrf.mxu0
  %v148 = vadd.f32 %v76, %v147
  %149 = vmatmul.f32.gmra.mxu0 %v110
  %v150 = vpop.f32.mrf.mxu0
  %v151 = vadd.f32 %v81, %v150
  %152 = vmatmul.f32.gmra.mxu0 %v113
  %v153 = vpop.f32.mrf.mxu0
  %v154 = vadd.f32 %v86, %v153
  %155 = vmatmul.f32.gmra.mxu0 %v116
  %v156 = vpop.f32.mrf.mxu0
  %v157 = vadd.f32 %v91, %v156
  %158 = vdwg.mxu0
  %v159 = vxor.u32 %v136, 2147483648
  %v160 = vxor.u32 %v139, 2147483648
  %v161 = vxor.u32 %v142, 2147483648
  %v162 = vxor.u32 %v145, 2147483648
  %v163 = vxor.u32 %v148, 2147483648
  %v164 = vxor.u32 %v151, 2147483648
  %v165 = vxor.u32 %v154, 2147483648
  %v166 = vxor.u32 %v157, 2147483648
  %v167 = vmul.f32 %v159, 1.442695
  %v168 = vpow.pop %v167
  %v169 = vmul.f32 %v160, 1.442695
  %v170 = vpow.pop %v169
  %v171 = vmul.f32 %v161, 1.442695
  %v172 = vpow.pop %v171
  %v173 = vmul.f32 %v162, 1.442695
  %v174 = vpow.pop %v173
  %v175 = vmul.f32 %v163, 1.442695
  %v176 = vpow.pop %v175
  %v177 = vmul.f32 %v164, 1.442695
  %v178 = vpow.pop %v177
  %v179 = vmul.f32 %v165, 1.442695
  %v180 = vpow.pop %v179
  %v181 = vmul.f32 %v166, 1.442695
  %v182 = vpow.pop %v181
  %v183 = vadd.f32 %v168, 1.0
  %v184 = vadd.f32 %v170, 1.0
  %v185 = vadd.f32 %v172, 1.0
  %v186 = vadd.f32 %v174, 1.0
  %v187 = vadd.f32 %v176, 1.0
  %v188 = vadd.f32 %v178, 1.0
  %v189 = vadd.f32 %v180, 1.0
  %v190 = vadd.f32 %v182, 1.0
  %v191 = vrcp.pop %v183
  %v192 = vmul.f32 %v183, %v191
  %v193 = vsub.f32 1.0, %v192
  %v194 = vmul.f32 %v191, %v193
  %v195 = vadd.f32 %v191, %v194
  %vm196 = vweird.f32 %v183
  %vm197 = vweird.f32 %v191
  %vm198 = vmor %vm196, %vm197
  %v199 = vsel %vm198, %v191, %v195
  %v200 = vand.u32 2147483647, %v183
  %vm201 = vcmp.eq.f32.partialorder %v200, 8.507059e+37
  %v202 = vand.u32 %v183, 2147483648
  %v203 = vor.u32 1.1754944e-38, %v202
  %v204 = vsel %vm201, %v203, %v199
  %v205 = vmul.f32 1.0, %v204
  %v206 = vrcp.pop %v184
  %v207 = vmul.f32 %v184, %v206
  %v208 = vsub.f32 1.0, %v207
  %v209 = vmul.f32 %v206, %v208
  %v210 = vadd.f32 %v206, %v209
  %vm211 = vweird.f32 %v184
  %vm212 = vweird.f32 %v206
  %vm213 = vmor %vm211, %vm212
  %v214 = vsel %vm213, %v206, %v210
  %v215 = vand.u32 2147483647, %v184
  %vm216 = vcmp.eq.f32.partialorder %v215, 8.507059e+37
  %v217 = vand.u32 %v184, 2147483648
  %v218 = vor.u32 1.1754944e-38, %v217
  %v219 = vsel %vm216, %v218, %v214
  %v220 = vmul.f32 1.0, %v219
  %v221 = vrcp.pop %v185
  %v222 = vmul.f32 %v185, %v221
  %v223 = vsub.f32 1.0, %v222
  %v224 = vmul.f32 %v221, %v223
  %v225 = vadd.f32 %v221, %v224
  %vm226 = vweird.f32 %v185
  %vm227 = vweird.f32 %v221
  %vm228 = vmor %vm226, %vm227
  %v229 = vsel %vm228, %v221, %v225
  %v230 = vand.u32 2147483647, %v185
  %vm231 = vcmp.eq.f32.partialorder %v230, 8.507059e+37
  %v232 = vand.u32 %v185, 2147483648
  %v233 = vor.u32 1.1754944e-38, %v232
  %v234 = vsel %vm231, %v233, %v229
  %v235 = vmul.f32 1.0, %v234
  %v236 = vrcp.pop %v186
  %v237 = vmul.f32 %v186, %v236
  %v238 = vsub.f32 1.0, %v237
  %v239 = vmul.f32 %v236, %v238
  %v240 = vadd.f32 %v236, %v239
  %vm241 = vweird.f32 %v186
  %vm242 = vweird.f32 %v236
  %vm243 = vmor %vm241, %vm242
  %v244 = vsel %vm243, %v236, %v240
  %v245 = vand.u32 2147483647, %v186
  %vm246 = vcmp.eq.f32.partialorder %v245, 8.507059e+37
  %v247 = vand.u32 %v186, 2147483648
  %v248 = vor.u32 1.1754944e-38, %v247
  %v249 = vsel %vm246, %v248, %v244
  %v250 = vmul.f32 1.0, %v249
  %v251 = vrcp.pop %v187
  %v252 = vmul.f32 %v187, %v251
  %v253 = vsub.f32 1.0, %v252
  %v254 = vmul.f32 %v251, %v253
  %v255 = vadd.f32 %v251, %v254
  %vm256 = vweird.f32 %v187
  %vm257 = vweird.f32 %v251
  %vm258 = vmor %vm256, %vm257
  %v259 = vsel %vm258, %v251, %v255
  %v260 = vand.u32 2147483647, %v187
  %vm261 = vcmp.eq.f32.partialorder %v260, 8.507059e+37
  %v262 = vand.u32 %v187, 2147483648
  %v263 = vor.u32 1.1754944e-38, %v262
  %v264 = vsel %vm261, %v263, %v259
  %v265 = vmul.f32 1.0, %v264
  %v266 = vrcp.pop %v188
  %v267 = vmul.f32 %v188, %v266
  %v268 = vsub.f32 1.0, %v267
  %v269 = vmul.f32 %v266, %v268
  %v270 = vadd.f32 %v266, %v269
  %vm271 = vweird.f32 %v188
  %vm272 = vweird.f32 %v266
  %vm273 = vmor %vm271, %vm272
  %v274 = vsel %vm273, %v266, %v270
  %v275 = vand.u32 2147483647, %v188
  %vm276 = vcmp.eq.f32.partialorder %v275, 8.507059e+37
  %v277 = vand.u32 %v188, 2147483648
  %v278 = vor.u32 1.1754944e-38, %v277
  %v279 = vsel %vm276, %v278, %v274
  %v280 = vmul.f32 1.0, %v279
  %v281 = vrcp.pop %v189
  %v282 = vmul.f32 %v189, %v281
  %v283 = vsub.f32 1.0, %v282
  %v284 = vmul.f32 %v281, %v283
  %v285 = vadd.f32 %v281, %v284
  %vm286 = vweird.f32 %v189
  %vm287 = vweird.f32 %v281
  %vm288 = vmor %vm286, %vm287
  %v289 = vsel %vm288, %v281, %v285
  %v290 = vand.u32 2147483647, %v189
  %vm291 = vcmp.eq.f32.partialorder %v290, 8.507059e+37
  %v292 = vand.u32 %v189, 2147483648
  %v293 = vor.u32 1.1754944e-38, %v292
  %v294 = vsel %vm291, %v293, %v289
  %v295 = vmul.f32 1.0, %v294
  %v296 = vrcp.pop %v190
  %v297 = vmul.f32 %v190, %v296
  %v298 = vsub.f32 1.0, %v297
  %v299 = vmul.f32 %v296, %v298
  %v300 = vadd.f32 %v296, %v299
  %vm301 = vweird.f32 %v190
  %vm302 = vweird.f32 %v296
  %vm303 = vmor %vm301, %vm302
  %v304 = vsel %vm303, %v296, %v300
  %v305 = vand.u32 2147483647, %v190
  %vm306 = vcmp.eq.f32.partialorder %v305, 8.507059e+37
  %v307 = vand.u32 %v190, 2147483648
  %v308 = vor.u32 1.1754944e-38, %v307
  %v309 = vsel %vm306, %v308, %v304
  %v310 = vmul.f32 1.0, %v309
  %v311 = vld [vmem:[%s3] sm:$0xff]
  %v312 = vld [vmem:[%s3 + $0x8] sm:$0xff]
  %v313 = vld [vmem:[%s3 + $0x10] sm:$0xff]
  %v314 = vld [vmem:[%s3 + $0x18] sm:$0xff]
  %v315 = vld [vmem:[%s3 + $0x20] sm:$0xff]
  %v316 = vld [vmem:[%s3 + $0x28] sm:$0xff]
  %v317 = vld [vmem:[%s3 + $0x30] sm:$0xff]
  %v318 = vld [vmem:[%s3 + $0x38] sm:$0xff]
  %v319 = vld [vmem:[%s4] sm:$0xff]
  %v320 = vld [vmem:[%s4 + $0x8] sm:$0xff]
  %v321 = vld [vmem:[%s4 + $0x10] sm:$0xff]
  %v322 = vld [vmem:[%s4 + $0x18] sm:$0xff]
  %v323 = vld [vmem:[%s4 + $0x20] sm:$0xff]
  %v324 = vld [vmem:[%s4 + $0x28] sm:$0xff]
  %v325 = vld [vmem:[%s4 + $0x30] sm:$0xff]
  %v326 = vld [vmem:[%s4 + $0x38] sm:$0xff]
  %328 = vset.pattern.permute.xlu0 0
  %329 = vperm.xlu0 %328, %v319
  %v330 = vpop.permute.xlu0 %329
  %333 = vset.pattern.permute.xlu0 0
  %334 = vperm.xlu0 %333, %v320
  %v335 = vpop.permute.xlu0 %334
  %338 = vset.pattern.permute.xlu0 0
  %339 = vperm.xlu0 %338, %v321
  %v340 = vpop.permute.xlu0 %339
  %343 = vset.pattern.permute.xlu0 0
  %344 = vperm.xlu0 %343, %v322
  %v345 = vpop.permute.xlu0 %344
  %348 = vset.pattern.permute.xlu0 0
  %349 = vperm.xlu0 %348, %v323
  %v350 = vpop.permute.xlu0 %349
  %353 = vset.pattern.permute.xlu0 0
  %354 = vperm.xlu0 %353, %v324
  %v355 = vpop.permute.xlu0 %354
  %358 = vset.pattern.permute.xlu0 0
  %359 = vperm.xlu0 %358, %v325
  %v360 = vpop.permute.xlu0 %359
  %363 = vset.pattern.permute.xlu0 0
  %364 = vperm.xlu0 %363, %v326
  %v365 = vpop.permute.xlu0 %364
  %vm367 = vcmask 523264
  %v369 = vsel %vm367, %v311, 0
  %v372 = vsel %vm367, %v312, 0
  %v375 = vsel %vm367, %v313, 0
  %v378 = vsel %vm367, %v314, 0
  %v381 = vsel %vm367, %v315, 0
  %v384 = vsel %vm367, %v316, 0
  %v387 = vsel %vm367, %v317, 0
  %v390 = vsel %vm367, %v318, 0
  %392 = vmatpush.msra.mxu0 0.0
  %393 = vmatpush.msra.mxu0 0.0
  %394 = vmatpush.msra.mxu0 0.0
  %395 = vmatpush.msra.mxu0 0.0
  %396 = vmatpush.msra.mxu0 0.0
  %397 = vmatpush.msra.mxu0 0.0
  %398 = vmatpush.msra.mxu0 0.0
  %399 = vmatpush.msra.mxu0 0.0
  %400 = vmatpush.msra.mxu0 %v310
  %401 = vmatpush.msra.mxu0 %v295
  %402 = vmatpush.msra.mxu0 %v280
  %403 = vmatpush.msra.mxu0 %v265
  %404 = vmatpush.msra.mxu0 %v250
  %405 = vmatpush.msra.mxu0 %v235
  %406 = vmatpush.msra.mxu0 %v220
  %407 = vmatpush.msra.mxu0 %v205
  %408 = vmatmul.f32.gmra.mxu0 %v369
  %v409 = vpop.f32.mrf.mxu0
  %v410 = vadd.f32 %v330, %v409
  %411 = vmatmul.f32.gmra.mxu0 %v372
  %v412 = vpop.f32.mrf.mxu0
  %v413 = vadd.f32 %v335, %v412
  %414 = vmatmul.f32.gmra.mxu0 %v375
  %v415 = vpop.f32.mrf.mxu0
  %v416 = vadd.f32 %v340, %v415
  %417 = vmatmul.f32.gmra.mxu0 %v378
  %v418 = vpop.f32.mrf.mxu0
  %v419 = vadd.f32 %v345, %v418
  %420 = vmatmul.f32.gmra.mxu0 %v381
  %v421 = vpop.f32.mrf.mxu0
  %v422 = vadd.f32 %v350, %v421
  %423 = vmatmul.f32.gmra.mxu0 %v384
  %v424 = vpop.f32.mrf.mxu0
  %v425 = vadd.f32 %v355, %v424
  %426 = vmatmul.f32.gmra.mxu0 %v387
  %v427 = vpop.f32.mrf.mxu0
  %v428 = vadd.f32 %v360, %v427
  %429 = vmatmul.f32.gmra.mxu0 %v390
  %v430 = vpop.f32.mrf.mxu0
  %v431 = vadd.f32 %v365, %v430
  %432 = vdwg.mxu0
  %v433 = vxor.u32 %v410, 2147483648
  %v434 = vxor.u32 %v413, 2147483648
  %v435 = vxor.u32 %v416, 2147483648
  %v436 = vxor.u32 %v419, 2147483648
  %v437 = vxor.u32 %v422, 2147483648
  %v438 = vxor.u32 %v425, 2147483648
  %v439 = vxor.u32 %v428, 2147483648
  %v440 = vxor.u32 %v431, 2147483648
  %v441 = vmul.f32 %v433, 1.442695
  %v442 = vpow.pop %v441
  %v443 = vmul.f32 %v434, 1.442695
  %v444 = vpow.pop %v443
  %v445 = vmul.f32 %v435, 1.442695
  %v446 = vpow.pop %v445
  %v447 = vmul.f32 %v436, 1.442695
  %v448 = vpow.pop %v447
  %v449 = vmul.f32 %v437, 1.442695
  %v450 = vpow.pop %v449
  %v451 = vmul.f32 %v438, 1.442695
  %v452 = vpow.pop %v451
  %v453 = vmul.f32 %v439, 1.442695
  %v454 = vpow.pop %v453
  %v455 = vmul.f32 %v440, 1.442695
  %v456 = vpow.pop %v455
  %v457 = vadd.f32 %v442, 1.0
  %v458 = vadd.f32 %v444, 1.0
  %v459 = vadd.f32 %v446, 1.0
  %v460 = vadd.f32 %v448, 1.0
  %v461 = vadd.f32 %v450, 1.0
  %v462 = vadd.f32 %v452, 1.0
  %v463 = vadd.f32 %v454, 1.0
  %v464 = vadd.f32 %v456, 1.0
  %v465 = vrcp.pop %v457
  %v466 = vmul.f32 %v457, %v465
  %v467 = vsub.f32 1.0, %v466
  %v468 = vmul.f32 %v465, %v467
  %v469 = vadd.f32 %v465, %v468
  %vm470 = vweird.f32 %v457
  %vm471 = vweird.f32 %v465
  %vm472 = vmor %vm470, %vm471
  %v473 = vsel %vm472, %v465, %v469
  %v474 = vand.u32 2147483647, %v457
  %vm475 = vcmp.eq.f32.partialorder %v474, 8.507059e+37
  %v476 = vand.u32 %v457, 2147483648
  %v477 = vor.u32 1.1754944e-38, %v476
  %v478 = vsel %vm475, %v477, %v473
  %v479 = vmul.f32 1.0, %v478
  %v480 = vrcp.pop %v458
  %v481 = vmul.f32 %v458, %v480
  %v482 = vsub.f32 1.0, %v481
  %v483 = vmul.f32 %v480, %v482
  %v484 = vadd.f32 %v480, %v483
  %vm485 = vweird.f32 %v458
  %vm486 = vweird.f32 %v480
  %vm487 = vmor %vm485, %vm486
  %v488 = vsel %vm487, %v480, %v484
  %v489 = vand.u32 2147483647, %v458
  %vm490 = vcmp.eq.f32.partialorder %v489, 8.507059e+37
  %v491 = vand.u32 %v458, 2147483648
  %v492 = vor.u32 1.1754944e-38, %v491
  %v493 = vsel %vm490, %v492, %v488
  %v494 = vmul.f32 1.0, %v493
  %v495 = vrcp.pop %v459
  %v496 = vmul.f32 %v459, %v495
  %v497 = vsub.f32 1.0, %v496
  %v498 = vmul.f32 %v495, %v497
  %v499 = vadd.f32 %v495, %v498
  %vm500 = vweird.f32 %v459
  %vm501 = vweird.f32 %v495
  %vm502 = vmor %vm500, %vm501
  %v503 = vsel %vm502, %v495, %v499
  %v504 = vand.u32 2147483647, %v459
  %vm505 = vcmp.eq.f32.partialorder %v504, 8.507059e+37
  %v506 = vand.u32 %v459, 2147483648
  %v507 = vor.u32 1.1754944e-38, %v506
  %v508 = vsel %vm505, %v507, %v503
  %v509 = vmul.f32 1.0, %v508
  %v510 = vrcp.pop %v460
  %v511 = vmul.f32 %v460, %v510
  %v512 = vsub.f32 1.0, %v511
  %v513 = vmul.f32 %v510, %v512
  %v514 = vadd.f32 %v510, %v513
  %vm515 = vweird.f32 %v460
  %vm516 = vweird.f32 %v510
  %vm517 = vmor %vm515, %vm516
  %v518 = vsel %vm517, %v510, %v514
  %v519 = vand.u32 2147483647, %v460
  %vm520 = vcmp.eq.f32.partialorder %v519, 8.507059e+37
  %v521 = vand.u32 %v460, 2147483648
  %v522 = vor.u32 1.1754944e-38, %v521
  %v523 = vsel %vm520, %v522, %v518
  %v524 = vmul.f32 1.0, %v523
  %v525 = vrcp.pop %v461
  %v526 = vmul.f32 %v461, %v525
  %v527 = vsub.f32 1.0, %v526
  %v528 = vmul.f32 %v525, %v527
  %v529 = vadd.f32 %v525, %v528
  %vm530 = vweird.f32 %v461
  %vm531 = vweird.f32 %v525
  %vm532 = vmor %vm530, %vm531
  %v533 = vsel %vm532, %v525, %v529
  %v534 = vand.u32 2147483647, %v461
  %vm535 = vcmp.eq.f32.partialorder %v534, 8.507059e+37
  %v536 = vand.u32 %v461, 2147483648
  %v537 = vor.u32 1.1754944e-38, %v536
  %v538 = vsel %vm535, %v537, %v533
  %v539 = vmul.f32 1.0, %v538
  %v540 = vrcp.pop %v462
  %v541 = vmul.f32 %v462, %v540
  %v542 = vsub.f32 1.0, %v541
  %v543 = vmul.f32 %v540, %v542
  %v544 = vadd.f32 %v540, %v543
  %vm545 = vweird.f32 %v462
  %vm546 = vweird.f32 %v540
  %vm547 = vmor %vm545, %vm546
  %v548 = vsel %vm547, %v540, %v544
  %v549 = vand.u32 2147483647, %v462
  %vm550 = vcmp.eq.f32.partialorder %v549, 8.507059e+37
  %v551 = vand.u32 %v462, 2147483648
  %v552 = vor.u32 1.1754944e-38, %v551
  %v553 = vsel %vm550, %v552, %v548
  %v554 = vmul.f32 1.0, %v553
  %v555 = vrcp.pop %v463
  %v556 = vmul.f32 %v463, %v555
  %v557 = vsub.f32 1.0, %v556
  %v558 = vmul.f32 %v555, %v557
  %v559 = vadd.f32 %v555, %v558
  %vm560 = vweird.f32 %v463
  %vm561 = vweird.f32 %v555
  %vm562 = vmor %vm560, %vm561
  %v563 = vsel %vm562, %v555, %v559
  %v564 = vand.u32 2147483647, %v463
  %vm565 = vcmp.eq.f32.partialorder %v564, 8.507059e+37
  %v566 = vand.u32 %v463, 2147483648
  %v567 = vor.u32 1.1754944e-38, %v566
  %v568 = vsel %vm565, %v567, %v563
  %v569 = vmul.f32 1.0, %v568
  %v570 = vrcp.pop %v464
  %v571 = vmul.f32 %v464, %v570
  %v572 = vsub.f32 1.0, %v571
  %v573 = vmul.f32 %v570, %v572
  %v574 = vadd.f32 %v570, %v573
  %vm575 = vweird.f32 %v464
  %vm576 = vweird.f32 %v570
  %vm577 = vmor %vm575, %vm576
  %v578 = vsel %vm577, %v570, %v574
  %v579 = vand.u32 2147483647, %v464
  %vm580 = vcmp.eq.f32.partialorder %v579, 8.507059e+37
  %v581 = vand.u32 %v464, 2147483648
  %v582 = vor.u32 1.1754944e-38, %v581
  %v583 = vsel %vm580, %v582, %v578
  %v584 = vmul.f32 1.0, %v583
  %v585 = vld [vmem:[%s5] sm:$0xff]
  %v586 = vld [vmem:[%s5 + $0x8] sm:$0xff]
  %v587 = vld [vmem:[%s5 + $0x10] sm:$0xff]
  %v588 = vld [vmem:[%s5 + $0x18] sm:$0xff]
  %v589 = vld [vmem:[%s5 + $0x20] sm:$0xff]
  %v590 = vld [vmem:[%s5 + $0x28] sm:$0xff]
  %v591 = vld [vmem:[%s5 + $0x30] sm:$0xff]
  %v592 = vld [vmem:[%s5 + $0x38] sm:$0xff]
  %594 = vset.pattern.permute.xlu0 0
  %595 = vperm.xlu0 %594, %v585
  %v596 = vpop.permute.xlu0 %595
  %599 = vset.pattern.permute.xlu0 0
  %600 = vperm.xlu0 %599, %v586
  %v601 = vpop.permute.xlu0 %600
  %604 = vset.pattern.permute.xlu0 0
  %605 = vperm.xlu0 %604, %v587
  %v606 = vpop.permute.xlu0 %605
  %609 = vset.pattern.permute.xlu0 0
  %610 = vperm.xlu0 %609, %v588
  %v611 = vpop.permute.xlu0 %610
  %614 = vset.pattern.permute.xlu0 0
  %615 = vperm.xlu0 %614, %v589
  %v616 = vpop.permute.xlu0 %615
  %619 = vset.pattern.permute.xlu0 0
  %620 = vperm.xlu0 %619, %v590
  %v621 = vpop.permute.xlu0 %620
  %624 = vset.pattern.permute.xlu0 0
  %625 = vperm.xlu0 %624, %v591
  %v626 = vpop.permute.xlu0 %625
  %629 = vset.pattern.permute.xlu0 0
  %630 = vperm.xlu0 %629, %v592
  %v631 = vpop.permute.xlu0 %630
  %v633 = vmul.f32 %v596, %v479
  %v634 = vmul.f32 %v601, %v494
  %v635 = vmul.f32 %v606, %v509
  %v636 = vmul.f32 %v611, %v524
  %v637 = vmul.f32 %v616, %v539
  %v638 = vmul.f32 %v621, %v554
  %v639 = vmul.f32 %v626, %v569
  %v640 = vmul.f32 %v631, %v584
  %v641 = vadd.f32 %v633, %v634
  %v642 = vadd.f32 %v641, %v635
  %v643 = vadd.f32 %v642, %v636
  %v644 = vrot.slane %v643, 4
  %v645 = vadd.f32 %v643, %v644
  %v646 = vrot.slane %v645, 2
  %v647 = vadd.f32 %v645, %v646
  %v648 = vrot.slane %v647, 1
  %v649 = vadd.f32 %v647, %v648
  %v650 = vadd.f32 %v637, %v638
  %v651 = vadd.f32 %v650, %v639
  %v652 = vadd.f32 %v651, %v640
  %v653 = vrot.slane %v652, 4
  %v654 = vadd.f32 %v652, %v653
  %v655 = vrot.slane %v654, 2
  %v656 = vadd.f32 %v654, %v655
  %v657 = vrot.slane %v656, 1
  %v658 = vadd.f32 %v656, %v657
  %vm659 = vcmask 1040384
  %v660 = vsel %vm659, %v649, %v658
  %v661 = vld [vmem:[#allocation2] sm:$0x1]
  %v663 = vperm.slane %v661, 0
  %664 = vset.pattern.permute.xlu0 0
  %665 = vperm.xlu0 %664, %v663
  %v666 = vpop.permute.xlu0 %665
  %v668 = vadd.f32 %v660, %v666
  %669 = vst [vmem:[%s9] sm:$0x3] %v668
  %v670 = vsub.f32 1.0, %v479
  %v671 = vsub.f32 1.0, %v494
  %v672 = vsub.f32 1.0, %v509
  %v673 = vsub.f32 1.0, %v524
  %v674 = vsub.f32 1.0, %v539
  %v675 = vsub.f32 1.0, %v554
  %v676 = vsub.f32 1.0, %v569
  %v677 = vsub.f32 1.0, %v584
  %v678 = vmul.f32 %v633, %v670
  %v679 = vmul.f32 %v634, %v671
  %v680 = vmul.f32 %v635, %v672
  %v681 = vmul.f32 %v636, %v673
  %v682 = vmul.f32 %v637, %v674
  %v683 = vmul.f32 %v638, %v675
  %v684 = vmul.f32 %v639, %v676
  %v685 = vmul.f32 %v640, %v677
  %v686 = vld [vmem:[%s8] sm:$0xff]
  %v687 = vld [vmem:[%s8 + $0x8] sm:$0xff]
  %v688 = vld [vmem:[%s8 + $0x10] sm:$0xff]
  %v689 = vld [vmem:[%s8 + $0x18] sm:$0xff]
  %v690 = vld [vmem:[%s8 + $0x20] sm:$0xff]
  %v691 = vld [vmem:[%s8 + $0x28] sm:$0xff]
  %v692 = vld [vmem:[%s8 + $0x30] sm:$0xff]
  %v693 = vld [vmem:[%s8 + $0x38] sm:$0xff]
  %v695 = vsel %vm367, %v686, 0
  %v698 = vsel %vm367, %v687, 0
  %v701 = vsel %vm367, %v688, 0
  %v704 = vsel %vm367, %v689, 0
  %v707 = vsel %vm367, %v690, 0
  %v710 = vsel %vm367, %v691, 0
  %v713 = vsel %vm367, %v692, 0
  %v716 = vsel %vm367, %v693, 0
  %718 = vmatpush.msra.mxu0 0.0
  %719 = vmatpush.msra.mxu0 0.0
  %720 = vmatpush.msra.mxu0 0.0
  %721 = vmatpush.msra.mxu0 0.0
  %722 = vmatpush.msra.mxu0 0.0
  %723 = vmatpush.msra.mxu0 0.0
  %724 = vmatpush.msra.mxu0 0.0
  %725 = vmatpush.msra.mxu0 0.0
  %726 = vmatpush.msra.mxu0 %v685
  %727 = vmatpush.msra.mxu0 %v684
  %728 = vmatpush.msra.mxu0 %v683
  %729 = vmatpush.msra.mxu0 %v682
  %730 = vmatpush.msra.mxu0 %v681
  %731 = vmatpush.msra.mxu0 %v680
  %732 = vmatpush.msra.mxu0 %v679
  %733 = vmatpush.msra.mxu0 %v678
  %734 = vmatmul.f32.gmra.mxu0 %v695
  %v735 = vpop.f32.mrf.mxu0
  %v736 = vadd.f32 0.0, %v735
  %737 = vmatmul.f32.gmra.mxu0 %v698
  %v738 = vpop.f32.mrf.mxu0
  %v739 = vadd.f32 0.0, %v738
  %740 = vmatmul.f32.gmra.mxu0 %v701
  %v741 = vpop.f32.mrf.mxu0
  %v742 = vadd.f32 0.0, %v741
  %743 = vmatmul.f32.gmra.mxu0 %v704
  %v744 = vpop.f32.mrf.mxu0
  %v745 = vadd.f32 0.0, %v744
  %746 = vmatmul.f32.gmra.mxu0 %v707
  %v747 = vpop.f32.mrf.mxu0
  %v748 = vadd.f32 0.0, %v747
  %749 = vmatmul.f32.gmra.mxu0 %v710
  %v750 = vpop.f32.mrf.mxu0
  %v751 = vadd.f32 0.0, %v750
  %752 = vmatmul.f32.gmra.mxu0 %v713
  %v753 = vpop.f32.mrf.mxu0
  %v754 = vadd.f32 0.0, %v753
  %755 = vmatmul.f32.gmra.mxu0 %v716
  %v756 = vpop.f32.mrf.mxu0
  %v757 = vadd.f32 0.0, %v756
  %758 = vdwg.mxu0
  %v759 = vmul.f32 %v736, %v205
  %v760 = vmul.f32 %v739, %v220
  %v761 = vmul.f32 %v742, %v235
  %v762 = vmul.f32 %v745, %v250
  %v763 = vmul.f32 %v748, %v265
  %v764 = vmul.f32 %v751, %v280
  %v765 = vmul.f32 %v754, %v295
  %v766 = vmul.f32 %v757, %v310
  %v767 = vsub.f32 1.0, %v205
  %v768 = vsub.f32 1.0, %v220
  %v769 = vsub.f32 1.0, %v235
  %v770 = vsub.f32 1.0, %v250
  %v771 = vsub.f32 1.0, %v265
  %v772 = vsub.f32 1.0, %v280
  %v773 = vsub.f32 1.0, %v295
  %v774 = vsub.f32 1.0, %v310
  %v775 = vmul.f32 %v759, %v767
  %v776 = vmul.f32 %v760, %v768
  %v777 = vmul.f32 %v761, %v769
  %v778 = vmul.f32 %v762, %v770
  %v779 = vmul.f32 %v763, %v771
  %v780 = vmul.f32 %v764, %v772
  %v781 = vmul.f32 %v765, %v773
  %v782 = vmul.f32 %v766, %v774
  %v783 = vld [vmem:[%s7] sm:$0xff]
  %v785 = vsel %vm367, %v783, 0
  %787 = vmatpush.msra.mxu0 0.0
  %788 = vmatpush.msra.mxu0 0.0
  %789 = vmatpush.msra.mxu0 0.0
  %790 = vmatpush.msra.mxu0 0.0
  %791 = vmatpush.msra.mxu0 0.0
  %792 = vmatpush.msra.mxu0 0.0
  %793 = vmatpush.msra.mxu0 0.0
  %794 = vmatpush.msra.mxu0 0.0
  %795 = vmatpush.msra.mxu0 %v782
  %796 = vmatpush.msra.mxu0 %v781
  %797 = vmatpush.msra.mxu0 %v780
  %798 = vmatpush.msra.mxu0 %v779
  %799 = vmatpush.msra.mxu0 %v778
  %800 = vmatpush.msra.mxu0 %v777
  %801 = vmatpush.msra.mxu0 %v776
  %802 = vmatpush.msra.mxu0 %v775
  %803 = vmatmul.f32.gmra.mxu0 %v785
  %v804 = vpop.f32.mrf.mxu0
  %v805 = vadd.f32 0.0, %v804
  %806 = vdwg.mxu0
  %v807 = vsub.f32 0.0, %v805
  %808 = vst [vmem:[%s10] sm:$0xff] %v807
  // Predicated region
  $region38: #{fc_free_energy_forward.1} parent=0 // pred_check
    _
  $region39: #{fc_free_energy_forward.1} parent=0 // pred_check_branch
    %810 = sbr.rel (0) target = $region41
  $region40: #{fc_free_energy_forward.1} parent=0 // pred_region
    _
  $region41: #{fc_free_energy_forward.1} parent=0 // pred_fallthru
    _
  // Predicated region
  $region42: #{fc_free_energy_forward.1} parent=0 // pred_check
    _
  $region43: #{fc_free_energy_forward.1} parent=0 // pred_check_branch
    %812 = sbr.rel (0) target = $region45
  $region44: #{fc_free_energy_forward.1} parent=0 // pred_region
    _
  $region45: #{fc_free_energy_forward.1} parent=0 // pred_fallthru
    _
  // Predicated region
  $region46: #{fc_free_energy_forward.1} parent=0 // pred_check
    _
  $region47: #{fc_free_energy_forward.1} parent=0 // pred_check_branch
    %814 = sbr.rel (0) target = $region49
  $region48: #{fc_free_energy_forward.1} parent=0 // pred_region
    _
  $region49: #{fc_free_energy_forward.1} parent=0 // pred_fallthru
    _
  // Predicated region
  $region50: #{fc_free_energy_forward.1} parent=0 // pred_check
    _
  $region51: #{fc_free_energy_forward.1} parent=0 // pred_check_branch
    %816 = sbr.rel (0) target = $region53
  $region52: #{fc_free_energy_forward.1} parent=0 // pred_region
    _
  $region53: #{fc_free_energy_forward.1} parent=0 // pred_fallthru
    _

</llo_original>
